<compile_context>
chip_gen: v7x
topology: tpu7x:2x2x1
jax: 0.10.0
libtpu: 0.0.40
codegen_flags: <defaults>
</compile_context>

<pallas_src>
import jax
import jax.numpy as jnp
from jax.experimental import pallas as pl
from jax.experimental.pallas import tpu as pltpu


def _p2p_kernel(x_ref, r_ref, t_ref, o_ref):
    # x_ref: (3, TN) VMEM   r_ref: (9,) SMEM (row-major R[k, c] at k*3+c)
    # t_ref: (3,)   SMEM    o_ref: (3, TN) VMEM
    x0 = x_ref[0:1, :].astype(jnp.float32)
    x1 = x_ref[1:2, :].astype(jnp.float32)
    x2 = x_ref[2:3, :].astype(jnp.float32)
    # out[c, :] = R[0,c]*x + R[1,c]*y + R[2,c]*z + t[c]  -- lane-dense VPU FMAs.
    for c in range(3):
        o_ref[c:c + 1, :] = (
            r_ref[0 * 3 + c] * x0
            + r_ref[1 * 3 + c] * x1
            + r_ref[2 * 3 + c] * x2
            + t_ref[c]
        ).astype(o_ref.dtype)


def point2point(point_image: jax.Array,
                rotation: jax.Array,
                translation: jax.Array,
                *,
                tile_n: int = 32768) -> jax.Array:
    """point_image @ rotation + translation, semantics of Point2Point.forward."""
    rotation = jnp.asarray(rotation, jnp.float32).reshape(-1)      # (9,)
    translation = jnp.asarray(translation, jnp.float32).reshape(-1)  # (3,)

    orig_shape = point_image.shape
    assert orig_shape[-1] == 3, "last axis must be xyz (size 3)"
    out_dtype = point_image.dtype

    # Lane-dense channels-first layout: (3, N).  The transpose is a cheap XLA
    # op; the consumer could keep (3, N) to avoid the transpose back entirely.
    x = point_image.reshape(-1, 3).T
    n = x.shape[1]

    # Big tiles amortize the ~0.35us per-step overhead; each (3, TN) f32 block
    # is only ~8*TN*4 B in VMEM (8 padded sublanes), so 32K lanes ~= 1 MiB.
    tn = max(128, min(tile_n, pl.cdiv(n, 128) * 128))
    grid = (pl.cdiv(n, tn),)  # ragged last block is masked by Pallas; no pad copy.

    itemsize = jnp.dtype(out_dtype).itemsize
    out = pl.pallas_call(
        _p2p_kernel,
        out_shape=jax.ShapeDtypeStruct((3, n), out_dtype),
        grid_spec=pltpu.PrefetchScalarGridSpec(
            num_scalar_prefetch=0,
            grid=grid,
            in_specs=[
                pl.BlockSpec((3, tn), lambda i: (0, i)),               # points
                pl.BlockSpec(memory_space=pltpu.MemorySpace.SMEM),     # rotation
                pl.BlockSpec(memory_space=pltpu.MemorySpace.SMEM),     # translation
            ],
            out_specs=pl.BlockSpec((3, tn), lambda i: (0, i)),
        ),
        compiler_params=pltpu.CompilerParams(
            dimension_semantics=("parallel",)),
        cost_estimate=pl.CostEstimate(
            flops=18 * n,
            transcendentals=0,
            bytes_accessed=2 * 3 * n * itemsize + 48),
    )(x, rotation, translation)

    return out.T.reshape(orig_shape)


if __name__ == "__main__":
    key = jax.random.PRNGKey(0)

    # Deterministic parameters (shapes from Point2Point.__init__): 3x3 rotation
    # (rotation about z by 30 degrees) and a 3-vector translation.
    theta = jnp.float32(jnp.pi / 6)
    c, s = jnp.cos(theta), jnp.sin(theta)
    rotation = jnp.array([[c, -s, 0.0],
                          [s,  c, 0.0],
                          [0.0, 0.0, 1.0]], dtype=jnp.float32)
    translation = jnp.array([0.1, -0.2, 0.3], dtype=jnp.float32)

    # Small point image: batch=2, spatial=16x16, xyz=3.
    point_image = jax.random.normal(key, (2, 16, 16, 3), dtype=jnp.float32)

    out = point2point(point_image, rotation, translation)
    out = jax.block_until_ready(out)

    # Reference check against plain JAX.
    ref = point_image @ rotation + translation
    assert out.shape == ref.shape
    assert jnp.allclose(out, ref, atol=1e-5, rtol=1e-5)

    print("KERNEL_OK")
</pallas_src>

<mosaic_0001>
module attributes {stable_mosaic.version = 11 : i64} {
  func.func @_p2p_kernel(%arg0: i32, %arg1: memref<3x512xf32, #tpu.memory_space<vmem>>, %arg2: memref<9xf32, #tpu.memory_space<smem>>, %arg3: memref<3xf32, #tpu.memory_space<smem>>, %arg4: memref<3x512xf32, #tpu.memory_space<vmem>>) attributes {dimension_semantics = [#tpu.dimension_semantics<parallel>], iteration_bounds = array<i64: 1>, scalar_prefetch = 0 : i64, scratch_operands = 0 : i64, tpu.core_type = #tpu.core_type<tc>, window_params = [{transform_indices = @transform_0, window_bounds = array<i64: 3, 512>}, {transform_indices = @transform_1, window_bounds = array<i64: 9>}, {transform_indices = @transform_2, window_bounds = array<i64: 3>}, {transform_indices = @transform_3, window_bounds = array<i64: 3, 512>}]} {
    %c0 = arith.constant 0 : index
    %c0_0 = arith.constant 0 : index
    %0 = vector.load %arg1[%c0, %c0_0] : memref<3x512xf32, #tpu.memory_space<vmem>>, vector<1x512xf32>
    %c1 = arith.constant 1 : index
    %c0_1 = arith.constant 0 : index
    %1 = vector.load %arg1[%c1, %c0_1] : memref<3x512xf32, #tpu.memory_space<vmem>>, vector<1x512xf32>
    %c2 = arith.constant 2 : index
    %c0_2 = arith.constant 0 : index
    %2 = vector.load %arg1[%c2, %c0_2] : memref<3x512xf32, #tpu.memory_space<vmem>>, vector<1x512xf32>
    %c0_3 = arith.constant 0 : index
    %3 = memref.load %arg2[%c0_3] : memref<9xf32, #tpu.memory_space<smem>>
    %4 = vector.broadcast %3 : f32 to vector<1x512xf32>
    %5 = arith.mulf %4, %0 : vector<1x512xf32>
    %c3 = arith.constant 3 : index
    %6 = memref.load %arg2[%c3] : memref<9xf32, #tpu.memory_space<smem>>
    %7 = vector.broadcast %6 : f32 to vector<1x512xf32>
    %8 = arith.mulf %7, %1 : vector<1x512xf32>
    %9 = arith.addf %5, %8 : vector<1x512xf32>
    %c6 = arith.constant 6 : index
    %10 = memref.load %arg2[%c6] : memref<9xf32, #tpu.memory_space<smem>>
    %11 = vector.broadcast %10 : f32 to vector<1x512xf32>
    %12 = arith.mulf %11, %2 : vector<1x512xf32>
    %13 = arith.addf %9, %12 : vector<1x512xf32>
    %c0_4 = arith.constant 0 : index
    %14 = memref.load %arg3[%c0_4] : memref<3xf32, #tpu.memory_space<smem>>
    %15 = vector.broadcast %14 : f32 to vector<1x512xf32>
    %16 = arith.addf %13, %15 : vector<1x512xf32>
    %c0_5 = arith.constant 0 : index
    %c0_6 = arith.constant 0 : index
    %17 = vector.load %arg4[%c0_5, %c0_6] : memref<3x512xf32, #tpu.memory_space<vmem>>, vector<1x512xf32>
    tpu.vector_store %arg4[%c0_5, %c0_6], %16 {strides = array<i32>} : memref<3x512xf32, #tpu.memory_space<vmem>>, vector<1x512xf32>,
    %c1_7 = arith.constant 1 : index
    %18 = memref.load %arg2[%c1_7] : memref<9xf32, #tpu.memory_space<smem>>
    %19 = vector.broadcast %18 : f32 to vector<1x512xf32>
    %20 = arith.mulf %19, %0 : vector<1x512xf32>
    %c4 = arith.constant 4 : index
    %21 = memref.load %arg2[%c4] : memref<9xf32, #tpu.memory_space<smem>>
    %22 = vector.broadcast %21 : f32 to vector<1x512xf32>
    %23 = arith.mulf %22, %1 : vector<1x512xf32>
    %24 = arith.addf %20, %23 : vector<1x512xf32>
    %c7 = arith.constant 7 : index
    %25 = memref.load %arg2[%c7] : memref<9xf32, #tpu.memory_space<smem>>
    %26 = vector.broadcast %25 : f32 to vector<1x512xf32>
    %27 = arith.mulf %26, %2 : vector<1x512xf32>
    %28 = arith.addf %24, %27 : vector<1x512xf32>
    %c1_8 = arith.constant 1 : index
    %29 = memref.load %arg3[%c1_8] : memref<3xf32, #tpu.memory_space<smem>>
    %30 = vector.broadcast %29 : f32 to vector<1x512xf32>
    %31 = arith.addf %28, %30 : vector<1x512xf32>
    %c1_9 = arith.constant 1 : index
    %c0_10 = arith.constant 0 : index
    %32 = vector.load %arg4[%c1_9, %c0_10] : memref<3x512xf32, #tpu.memory_space<vmem>>, vector<1x512xf32>
    tpu.vector_store %arg4[%c1_9, %c0_10], %31 {strides = array<i32>} : memref<3x512xf32, #tpu.memory_space<vmem>>, vector<1x512xf32>,
    %c2_11 = arith.constant 2 : index
    %33 = memref.load %arg2[%c2_11] : memref<9xf32, #tpu.memory_space<smem>>
    %34 = vector.broadcast %33 : f32 to vector<1x512xf32>
    %35 = arith.mulf %34, %0 : vector<1x512xf32>
    %c5 = arith.constant 5 : index
    %36 = memref.load %arg2[%c5] : memref<9xf32, #tpu.memory_space<smem>>
    %37 = vector.broadcast %36 : f32 to vector<1x512xf32>
    %38 = arith.mulf %37, %1 : vector<1x512xf32>
    %39 = arith.addf %35, %38 : vector<1x512xf32>
    %c8 = arith.constant 8 : index
    %40 = memref.load %arg2[%c8] : memref<9xf32, #tpu.memory_space<smem>>
    %41 = vector.broadcast %40 : f32 to vector<1x512xf32>
    %42 = arith.mulf %41, %2 : vector<1x512xf32>
    %43 = arith.addf %39, %42 : vector<1x512xf32>
    %c2_12 = arith.constant 2 : index
    %44 = memref.load %arg3[%c2_12] : memref<3xf32, #tpu.memory_space<smem>>
    %45 = vector.broadcast %44 : f32 to vector<1x512xf32>
    %46 = arith.addf %43, %45 : vector<1x512xf32>
    %c2_13 = arith.constant 2 : index
    %c0_14 = arith.constant 0 : index
    %47 = vector.load %arg4[%c2_13, %c0_14] : memref<3x512xf32, #tpu.memory_space<vmem>>, vector<1x512xf32>
    tpu.vector_store %arg4[%c2_13, %c0_14], %46 {strides = array<i32>} : memref<3x512xf32, #tpu.memory_space<vmem>>, vector<1x512xf32>,
    return
  }
  func.func @transform_0(%arg0: i32) -> (i32, i32) {
    %c0_i32 = arith.constant 0 : i32
    %c0_i32_0 = arith.constant 0 : i32
    return %c0_i32, %arg0 : i32, i32
  }
  func.func @transform_1(%arg0: i32) -> i32 {
    %c0_i32 = arith.constant 0 : i32
    %c0_i32_0 = arith.constant 0 : i32
    return %c0_i32 : i32
  }
  func.func @transform_2(%arg0: i32) -> i32 {
    %c0_i32 = arith.constant 0 : i32
    %c0_i32_0 = arith.constant 0 : i32
    return %c0_i32 : i32
  }
  func.func @transform_3(%arg0: i32) -> (i32, i32) {
    %c0_i32 = arith.constant 0 : i32
    %c0_i32_0 = arith.constant 0 : i32
    return %c0_i32, %arg0 : i32, i32
  }
}

</mosaic_0001>

<llo_original>
// kernel: tpu_custom_call.1
$region0: #{tpu_custom_call.1}
  #allocation0 [shape = 'u32[]', space=smem, size = 0x4, offset = 0x4, fixed_abs, tag = 'smem constant byte address 0x4 - core index']
  #allocation1 [shape = 'u32[144,128]{1,0:T(1,128)}', space=vmem, size = 0x12000, scoped, tag = 'internal scratch']
  %s0 = inlined_call_operand.hbm [shape: f32[3,512], index: 0, kind: input, shape index: {}]
  %s1 = inlined_call_operand.vmem [shape: f32[9], index: 1, kind: input, shape index: {}]
  %s2 = inlined_call_operand.vmem [shape: f32[3], index: 2, kind: input, shape index: {}]
  %s3 = inlined_call_operand.hbm [shape: f32[3,512], index: 3, kind: output, shape index: {}]
  %s4 = sld [smem:[#allocation0]]
  $region34: #{tpu_custom_call.1} parent=0
    _
  %s6 = ssub.s32 1, %s4
  %s7 = scalar_select 0, %s6, %s4
  $region1: #{tpu_custom_call.1} parent=0
    #allocation2 [shape = 'u8[8192]{0}', space=vmem, size = 0x2000, scoped, tag = 'input window, operand 0, single buffered']
    #allocation3 [shape = 's32[1]{0}', space=sflag, size = 0x4, scoped, tag = 'scoped memory for tpu_custom_call.1']
    #allocation4 [shape = 's32[1]{0}', space=sflag, size = 0x4, scoped, tag = 'scoped memory for tpu_custom_call.1']
    #allocation5 [shape = 's32[1]{0}', space=sflag, size = 0x4, scoped, tag = 'scoped memory for tpu_custom_call.1']
    #allocation6 [shape = 'u8[512]{0}', space=smem, size = 0x200, scoped, tag = 'input window, operand 1, single buffered']
    #allocation7 [shape = 'u8[512]{0}', space=smem, size = 0x200, scoped, tag = 'input window, operand 2, single buffered']
    #allocation8 [shape = 's32[1]{0}', space=sflag, size = 0x4, scoped, tag = 'scoped memory for tpu_custom_call.1']
    #allocation9 [shape = 'u8[8192]{0}', space=vmem, size = 0x2000, scoped, tag = 'output window, operand 0, single buffered']
    %8 = vsyncpa [#allocation3], 0
    %9 = vsyncpa [#allocation5], 0
    %10 = vsyncpa [#allocation8], 0
    %11 = vsyncpa [#allocation4], 0
    // Predicated region
    $region2: #{tpu_custom_call.1} parent=1 // pred_check
      _
    $region3: #{tpu_custom_call.1} parent=1 // pred_check_branch
      %13 = sbr.rel (0) target = $region5
    $region4: #{tpu_custom_call.1} parent=1 // pred_region
      %s15 = ssub.s32 256, 256
      %16 = vsyncadd [#allocation3], %s15
      %s18 = sshll.u32 [#allocation2], 4
      %s19 = int_to_ptr.vmem [resolvable:$true] %s18
      %21 = dma.hbm_to_vmem [thread:$0]  %s0, 256, %s19, [#allocation3]
    $region5: #{tpu_custom_call.1} parent=1 // pred_fallthru
      _
    // Predicated region
    $region6: #{tpu_custom_call.1} parent=1 // pred_check
      _
    $region7: #{tpu_custom_call.1} parent=1 // pred_check_branch
      %23 = sbr.rel (0) target = $region9
    $region8: #{tpu_custom_call.1} parent=1 // pred_region
      %s25 = ssub.s32 16, 16
      %26 = vsyncadd [#allocation5], %s25
      %s28 = sshll.u32 %s1, 4
      %s29 = int_to_ptr.vmem [resolvable:$true] %s28
      %31 = dma.vmem_to_smem %s29, 16, [#allocation6], [#allocation5]
    $region9: #{tpu_custom_call.1} parent=1 // pred_fallthru
      _
    // Predicated region
    $region10: #{tpu_custom_call.1} parent=1 // pred_check
      _
    $region11: #{tpu_custom_call.1} parent=1 // pred_check_branch
      %33 = sbr.rel (0) target = $region13
    $region12: #{tpu_custom_call.1} parent=1 // pred_region
      %s35 = ssub.s32 16, 16
      %36 = vsyncadd [#allocation8], %s35
      %s38 = sshll.u32 %s2, 4
      %s39 = int_to_ptr.vmem [resolvable:$true] %s38
      %41 = dma.vmem_to_smem %s39, 16, [#allocation7], [#allocation8]
    $region13: #{tpu_custom_call.1} parent=1 // pred_fallthru
      _
    // Predicated region
    $region14: #{tpu_custom_call.1} parent=1 // pred_check
      _
    $region15: #{tpu_custom_call.1} parent=1 // pred_check_branch
      %43 = sbr.rel (0) target = $region17
    $region16: #{tpu_custom_call.1} parent=1 // pred_region
      %44 = dma.done [#allocation3], 256
    $region17: #{tpu_custom_call.1} parent=1 // pred_fallthru
      _
    // Predicated region
    $region18: #{tpu_custom_call.1} parent=1 // pred_check
      _
    $region19: #{tpu_custom_call.1} parent=1 // pred_check_branch
      %46 = sbr.rel (0) target = $region21
    $region20: #{tpu_custom_call.1} parent=1 // pred_region
      %47 = dma.done [#allocation5], 16
    $region21: #{tpu_custom_call.1} parent=1 // pred_fallthru
      _
    // Predicated region
    $region22: #{tpu_custom_call.1} parent=1 // pred_check
      _
    $region23: #{tpu_custom_call.1} parent=1 // pred_check_branch
      %49 = sbr.rel (0) target = $region25
    $region24: #{tpu_custom_call.1} parent=1 // pred_region
      %50 = dma.done [#allocation8], 16
    $region25: #{tpu_custom_call.1} parent=1 // pred_fallthru
      _
    %51 = sfence
    %v52 = vld [vmem:[#allocation2] ss:$4 sm:$0xf]
    %s53 = scalar_lea.vmem [#allocation2], 1
    %v54 = vld [vmem:[%s53] ss:$4 sm:$0xf]
    %s55 = scalar_lea.vmem [#allocation2], 2
    %v56 = vld [vmem:[%s55] ss:$4 sm:$0xf]
    %s57 = sld [smem:[#allocation6]]
    %v58 = vstv %s57
    %v59 = vmul.f32 %v58, %v52
    %s60 = sld [smem:[#allocation6 + $0x3]]
    %v61 = vstv %s60
    %v62 = vmul.f32 %v61, %v54
    %v63 = vadd.f32 %v59, %v62
    %s64 = sld [smem:[#allocation6 + $0x6]]
    %v65 = vstv %s64
    %v66 = vmul.f32 %v65, %v56
    %v67 = vadd.f32 %v63, %v66
    %s68 = sld [smem:[#allocation7]]
    %v69 = vstv %s68
    %v70 = vadd.f32 %v67, %v69
    %v71 = vlaneseq
    %vm72 = vcmp.ge.s32.totalorder %v71, 0
    %vm73 = vcmp.lt.s32.totalorder %v71, 512
    %vm74 = vmand %vm72, %vm73
    %75 = vst.msk [vmem:[#allocation9] ss:$4 sm:$0xf] %vm74, %v70
    %s76 = sld [smem:[#allocation6 + $0x1]]
    %v77 = vstv %s76
    %v78 = vmul.f32 %v77, %v52
    %s79 = sld [smem:[#allocation6 + $0x4]]
    %v80 = vstv %s79
    %v81 = vmul.f32 %v80, %v54
    %v82 = vadd.f32 %v78, %v81
    %s83 = sld [smem:[#allocation6 + $0x7]]
    %v84 = vstv %s83
    %v85 = vmul.f32 %v84, %v56
    %v86 = vadd.f32 %v82, %v85
    %s87 = sld [smem:[#allocation7 + $0x1]]
    %v88 = vstv %s87
    %v89 = vadd.f32 %v86, %v88
    %s90 = scalar_lea.vmem [#allocation9], 1
    %91 = vst.msk [vmem:[%s90] ss:$4 sm:$0xf] %vm74, %v89
    %s92 = sld [smem:[#allocation6 + $0x2]]
    %v93 = vstv %s92
    %v94 = vmul.f32 %v93, %v52
    %s95 = sld [smem:[#allocation6 + $0x5]]
    %v96 = vstv %s95
    %v97 = vmul.f32 %v96, %v54
    %v98 = vadd.f32 %v94, %v97
    %s99 = sld [smem:[#allocation6 + $0x8]]
    %v100 = vstv %s99
    %v101 = vmul.f32 %v100, %v56
    %v102 = vadd.f32 %v98, %v101
    %s103 = sld [smem:[#allocation7 + $0x2]]
    %v104 = vstv %s103
    %v105 = vadd.f32 %v102, %v104
    %s106 = scalar_lea.vmem [#allocation9], 2
    %107 = vst.msk [vmem:[%s106] ss:$4 sm:$0xf] %vm74, %v105
    // Predicated region
    $region26: #{tpu_custom_call.1} parent=1 // pred_check
      _
    $region27: #{tpu_custom_call.1} parent=1 // pred_check_branch
      %109 = sbr.rel (0) target = $region29
    $region28: #{tpu_custom_call.1} parent=1 // pred_region
      %s111 = ssub.s32 256, 256
      %112 = vsyncadd [#allocation4], %s111
      %s114 = sshll.u32 [#allocation9], 4
      %s115 = int_to_ptr.vmem [resolvable:$true] %s114
      %117 = dma.vmem_to_hbm [thread:$0]  %s115, 256, %s3, [#allocation4]
    $region29: #{tpu_custom_call.1} parent=1 // pred_fallthru
      _
    // Predicated region
    $region30: #{tpu_custom_call.1} parent=1 // pred_check
      _
    $region31: #{tpu_custom_call.1} parent=1 // pred_check_branch
      %119 = sbr.rel (0) target = $region33
    $region32: #{tpu_custom_call.1} parent=1 // pred_region
      %120 = dma.done [#allocation4], 256
    $region33: #{tpu_custom_call.1} parent=1 // pred_fallthru
      _
    %121 = vsyncpa [#allocation3], 1
    %122 = vsyncpa [#allocation4], 1
    %123 = vsyncpa [#allocation5], 1
    %124 = vsyncpa [#allocation8], 1

</llo_original>
